<compile_context>
chip_gen: v7x
topology: tpu7x:2x2x1
jax: 0.10.0
libtpu: 0.0.40
codegen_flags: <defaults>
</compile_context>

<pallas_src>
import jax
import jax.numpy as jnp
from jax import lax
from jax.experimental import pallas as pl
from jax.experimental.pallas import tpu as pltpu


def _gelu_kernel(x_ref, o_ref):
    x = x_ref[...].astype(jnp.float32)
    # Exact GELU: 0.5 * x * (1 + erf(x / sqrt(2)))  == nn.GELU(approximate='none')
    inv_sqrt2 = 0.7071067811865476
    y = 0.5 * x * (1.0 + lax.erf(x * inv_sqrt2))
    o_ref[...] = y.astype(o_ref.dtype)


def _choose_layout(total, last_dim):
    """Pick a lane-dense (rows, lanes) 2D view of the flat tensor.

    Keeps `lanes` a multiple of 128 (full-width unmasked vector stores — the
    tightest path on v5e's single vst slot) and trades lanes for rows until the
    row count is a multiple of 8, so the row tile can be 8-aligned with no
    masked partial blocks.  For [1,14,14,2048] this yields (392, 1024).
    """
    if last_dim % 128 == 0 and total % last_dim == 0:
        lanes = last_dim
    elif total % 128 == 0:
        lanes = 128
    else:
        return 1, total  # degenerate fallback: single full block
    rows = total // lanes
    while rows % 8 != 0 and lanes % 256 == 0 and lanes > 512:
        lanes //= 2
        rows *= 2
    return rows, lanes


def _pick_tile_rows(rows, lanes, itemsize):
    """Largest 8-aligned row tile such that:
      (a) one block stays <= ~2 MiB (double-buffered in+out is well under the
          scoped-VMEM default on v5e/v6e and the smaller v7x VMEM), and
      (b) the grid has >= 2 steps, so DMA-in / compute / DMA-out pipeline and
          the two v7x TensorCores both get work.
    """
    max_block_bytes = 2 * 1024 * 1024
    max_tile = max(8, (max_block_bytes // (lanes * itemsize)) // 8 * 8)
    if rows <= 8:
        return rows  # tiny tensor: single full block (block == full array dims)
    # Prefer an exact divisor of `rows` (no masked partial last block at all).
    t = min(max_tile, (rows // 2) // 8 * 8)
    while t >= 8:
        if rows % t == 0:
            return t
        t -= 8
    # Fall back to cdiv tiling with a masked partial last block (correct for
    # elementwise ops: reads of the padded region are garbage, stores masked).
    target = ((rows + 3) // 4 + 7) // 8 * 8  # round_up_8(cdiv(rows, 4))
    return min(max_tile, max(8, target))


def gelu_pallas(x):
    """Exact GELU over an arbitrary-shape tensor via a Pallas TPU kernel."""
    orig_shape = x.shape
    total = x.size
    itemsize = jnp.dtype(x.dtype).itemsize

    rows, lanes = _choose_layout(total, orig_shape[-1])
    tile_rows = _pick_tile_rows(rows, lanes, itemsize)
    grid = (pl.cdiv(rows, tile_rows),)

    x2d = x.reshape(rows, lanes)  # free view for a contiguous tensor
    out = pl.pallas_call(
        _gelu_kernel,
        out_shape=jax.ShapeDtypeStruct((rows, lanes), x.dtype),
        grid_spec=pl.GridSpec(
            grid=grid,
            in_specs=[pl.BlockSpec((tile_rows, lanes), lambda i: (i, 0))],
            out_specs=pl.BlockSpec((tile_rows, lanes), lambda i: (i, 0)),
        ),
        compiler_params=pltpu.CompilerParams(
            dimension_semantics=("parallel",),
        ),
    )(x2d)
    return out.reshape(orig_shape)


if __name__ == "__main__":
    key = jax.random.PRNGKey(0)
    # Shape implied by the module's forward: NHWC [1, 14, 14, 2048] (~1.6 MB).
    x = jax.random.normal(key, (1, 14, 14, 2048), dtype=jnp.float32)

    y = gelu_pallas(x)
    jax.block_until_ready(y)

    # Reference check against exact (erf) GELU.
    y_ref = jax.nn.gelu(x, approximate=False)
    assert y.shape == x.shape
    assert jnp.allclose(y, y_ref, atol=1e-5, rtol=1e-5), "mismatch vs reference"

    print("KERNEL_OK")
</pallas_src>

<mosaic_0001>
module attributes {stable_mosaic.version = 11 : i64} {
  func.func @_gelu_kernel(%arg0: i32, %arg1: memref<56x1024xf32, #tpu.memory_space<vmem>>, %arg2: memref<56x1024xf32, #tpu.memory_space<vmem>>) attributes {dimension_semantics = [#tpu.dimension_semantics<parallel>], iteration_bounds = array<i64: 7>, scalar_prefetch = 0 : i64, scratch_operands = 0 : i64, tpu.core_type = #tpu.core_type<tc>, window_params = [{transform_indices = @transform_0, window_bounds = array<i64: 56, 1024>}, {transform_indices = @transform_1, window_bounds = array<i64: 56, 1024>}]} {
    %c0 = arith.constant 0 : index
    %c0_0 = arith.constant 0 : index
    %0 = vector.load %arg1[%c0, %c0_0] : memref<56x1024xf32, #tpu.memory_space<vmem>>, vector<56x1024xf32>
    %cst = arith.constant 5.000000e-01 : f32
    %1 = vector.broadcast %cst : f32 to vector<56x1024xf32>
    %2 = arith.mulf %1, %0 : vector<56x1024xf32>
    %cst_1 = arith.constant 0.707106769 : f32
    %3 = vector.broadcast %cst_1 : f32 to vector<56x1024xf32>
    %4 = arith.mulf %0, %3 : vector<56x1024xf32>
    %5 = math.erf %4 : vector<56x1024xf32>
    %cst_2 = arith.constant 1.000000e+00 : f32
    %6 = vector.broadcast %cst_2 : f32 to vector<56x1024xf32>
    %7 = arith.addf %6, %5 : vector<56x1024xf32>
    %8 = arith.mulf %2, %7 : vector<56x1024xf32>
    %c0_3 = arith.constant 0 : index
    %c0_4 = arith.constant 0 : index
    %9 = vector.load %arg2[%c0_3, %c0_4] : memref<56x1024xf32, #tpu.memory_space<vmem>>, vector<56x1024xf32>
    tpu.vector_store %arg2[%c0_3, %c0_4], %8 {strides = array<i32>} : memref<56x1024xf32, #tpu.memory_space<vmem>>, vector<56x1024xf32>,
    return
  }
  func.func @transform_0(%arg0: i32) -> (i32, i32) {
    %c0_i32 = arith.constant 0 : i32
    %c0_i32_0 = arith.constant 0 : i32
    return %arg0, %c0_i32 : i32, i32
  }
  func.func @transform_1(%arg0: i32) -> (i32, i32) {
    %c0_i32 = arith.constant 0 : i32
    %c0_i32_0 = arith.constant 0 : i32
    return %arg0, %c0_i32 : i32, i32
  }
}

</mosaic_0001>

<llo_original>
// kernel: tpu_custom_call.1
$region0: #{tpu_custom_call.1}
  #allocation0 [shape = 'u32[]', space=smem, size = 0x4, offset = 0x4, fixed_abs, tag = 'smem constant byte address 0x4 - core index']
  #allocation1 [shape = 'u32[144,128]{1,0:T(1,128)}', space=vmem, size = 0x12000, scoped, tag = 'internal scratch']
  %s0 = inlined_call_operand.hbm [shape: f32[392,1024], index: 0, kind: input, shape index: {}]
  %s1 = inlined_call_operand.hbm [shape: f32[392,1024], index: 1, kind: output, shape index: {}]
  %s2 = sld [smem:[#allocation0]]
  $region41: #{tpu_custom_call.1} parent=0
    _
  %s4 = ssub.s32 1, %s2
  %s5 = scalar_select 0, %s4, %s2
  $region1: #{tpu_custom_call.1} parent=0
    #allocation2 [shape = 'u8[458752]{0}', space=vmem, size = 0x70000, scoped, tag = 'input window, operand 0']
    #allocation3 [shape = 's32[2]{0}', space=sflag, size = 0x8, scoped, tag = 'scoped memory for tpu_custom_call.1']
    #allocation4 [shape = 's32[2]{0}', space=sflag, size = 0x8, scoped, tag = 'scoped memory for tpu_custom_call.1']
    #allocation5 [shape = 'u8[458752]{0}', space=vmem, size = 0x70000, scoped, tag = 'output window, operand 0']
    %6 = vsyncpa [#allocation3], 0
    %s7 = scalar_lea.sflag [#allocation3], 1
    %8 = vsyncpa %s7, 0
    %9 = vsyncpa [#allocation4], 0
    %s10 = scalar_lea.sflag [#allocation4], 1
    %11 = vsyncpa %s10, 0
    loop: start=0, step=1, limit=9
    $region2: #{tpu_custom_call.1} parent=1 // loop_pre_header
      _
    $region3: #{tpu_custom_call.1} parent=1 // loop_header
      %s13 = sphi 0, %s17
      %p14 = scmp.ge.s32.totalorder %s13, 9
      %s23 = sphi 0, %s25
      %s26 = sphi 0, %s23
      %s27 = sphi 0, %s26
      %s43 = sphi 0, %s27
      %s49 = sphi 0, %s51
      %s52 = sphi 0, %s49
      %s53 = sphi 0, %s52
      %s69 = sphi 0, %s53
    $region4: #{tpu_custom_call.1} parent=1 // loop_header_branch
      %16 = sbr.rel (%p14) target = $region8
    $region5: #{tpu_custom_call.1} parent=1 // loop_body
      %s18 = ssub.s32 %s13, 1
      %s19 = ssub.s32 %s13, 2
      %s20 = sadd.s32 %s13, 1
      %s21 = ssub.s32 %s13, %s20
      %p22 = scmp.eq.s32.totalorder %s21, 0
      %s24 = sadd.s32 %s23, 1
      %s25 = scalar_select %p22, %s23, %s24
      %p28 = pneg %p22
      %p29 = scmp.eq.s32.totalorder %s13, 6
      %p30 = por %p28, %p29
      %p31 = scmp.ne.s32.totalorder %s23, %s26
      %p32 = scmp.eq.s32.totalorder %s13, 0
      %p33 = por %p31, %p32
      %p34 = scmp.ne.s32.totalorder %s23, %s26
      %p35 = scmp.eq.s32.totalorder %s18, 6
      %p36 = por %p34, %p35
      %p37 = scmp.ne.s32.totalorder %s26, %s27
      %p38 = scmp.eq.s32.totalorder %s18, 0
      %p39 = por %p37, %p38
      %p40 = scmp.ne.s32.totalorder %s26, %s27
      %p41 = scmp.eq.s32.totalorder %s19, 6
      %p42 = por %p40, %p41
      %p44 = scmp.ne.s32.totalorder %s27, %s43
      %p45 = scmp.eq.s32.totalorder %s19, 0
      %p46 = por %p44, %p45
      %s47 = ssub.s32 %s13, %s20
      %p48 = scmp.eq.s32.totalorder %s47, 0
      %s50 = sadd.s32 %s49, 1
      %s51 = scalar_select %p48, %s49, %s50
      %p54 = pneg %p48
      %p55 = scmp.eq.s32.totalorder %s13, 6
      %p56 = por %p54, %p55
      %p57 = scmp.ne.s32.totalorder %s49, %s52
      %p58 = scmp.eq.s32.totalorder %s13, 0
      %p59 = por %p57, %p58
      %p60 = scmp.ne.s32.totalorder %s49, %s52
      %p61 = scmp.eq.s32.totalorder %s18, 6
      %p62 = por %p60, %p61
      %p63 = scmp.ne.s32.totalorder %s52, %s53
      %p64 = scmp.eq.s32.totalorder %s18, 0
      %p65 = por %p63, %p64
      %p66 = scmp.ne.s32.totalorder %s52, %s53
      %p67 = scmp.eq.s32.totalorder %s19, 6
      %p68 = por %p66, %p67
      %p70 = scmp.ne.s32.totalorder %s53, %s69
      %p71 = scmp.eq.s32.totalorder %s19, 0
      %p72 = por %p70, %p71
      %p73 = scmp.le.s32.totalorder 1, %s13
      %p74 = scmp.lt.s32.totalorder %s13, 8
      %p75 = pnand %p73, %p74
      %p76 = pneg %p75
      // Predicated region
      $region9: #{tpu_custom_call.1} parent=5 // pred_check
        _
      $region10: #{tpu_custom_call.1} parent=5 // pred_check_branch
        %78 = sbr.rel (%p75) target = $region12
      $region11: #{tpu_custom_call.1} parent=5 // pred_region
        %s79 = ssub.s32 %s13, 1
      $region12: #{tpu_custom_call.1} parent=5 // pred_fallthru
        _
      %p80 = scmp.lt.s32.totalorder %s13, 7
      // Predicated region
      $region13: #{tpu_custom_call.1} parent=5 // pred_check
        %p81 = pneg %p80
      $region14: #{tpu_custom_call.1} parent=5 // pred_check_branch
        %83 = sbr.rel (%p81) target = $region16
      $region15: #{tpu_custom_call.1} parent=5 // pred_region
        // Predicated region
        $region17: #{tpu_custom_call.1} parent=15 // pred_check
          %p84 = pneg %p33
        $region18: #{tpu_custom_call.1} parent=15 // pred_check_branch
          %86 = sbr.rel (%p84) target = $region20
        $region19: #{tpu_custom_call.1} parent=15 // pred_region
          %s87 = sand.u32 %s23, 1
          %s88 = scalar_lea.sflag [#allocation3], %s87
          %s89 = sand.u32 %s23, 1
          %s90 = smul.addr %s89, 448
          %s91 = scalar_lea.vmem [#allocation2], %s90
          %s92 = smul.u32 7, %s13
          %s94 = ssub.s32 7168, 7168
          %95 = vsyncadd %s88, %s94
          %s96 = smul.addr %s92, 8
          %s97 = smul.addr %s96, 128
          %s98 = scalar_lea.hbm %s0, %s97
          %s99 = sshll.u32 %s91, 4
          %s100 = int_to_ptr.vmem [resolvable:$true] %s99
          %105 = dma.hbm_to_vmem [thread:$0]  %s98, 7168, %s100, %s88, 1024, 1024, 64
        $region20: #{tpu_custom_call.1} parent=15 // pred_fallthru
          _
      $region16: #{tpu_custom_call.1} parent=5 // pred_fallthru
        _
      %p106 = scmp.le.s32.totalorder 1, %s13
      %p107 = scmp.lt.s32.totalorder %s13, 8
      %p108 = pnand %p106, %p107
      %p109 = pneg %p108
      // Predicated region
      $region21: #{tpu_custom_call.1} parent=5 // pred_check
        _
      $region22: #{tpu_custom_call.1} parent=5 // pred_check_branch
        %111 = sbr.rel (%p108) target = $region24
      $region23: #{tpu_custom_call.1} parent=5 // pred_region
        %s112 = ssub.s32 %s13, 1
        %s113 = sand.u32 %s26, 1
        %s114 = scalar_lea.sflag [#allocation3], %s113
        %s115 = sand.u32 %s26, 1
        %s116 = smul.addr %s115, 448
        %s117 = scalar_lea.vmem [#allocation2], %s116
        // Predicated region
        $region25: #{tpu_custom_call.1} parent=23 // pred_check
          %p118 = pneg %p39
        $region26: #{tpu_custom_call.1} parent=23 // pred_check_branch
          %120 = sbr.rel (%p118) target = $region28
        $region27: #{tpu_custom_call.1} parent=23 // pred_region
          %121 = dma.done %s114, 7168
        $region28: #{tpu_custom_call.1} parent=23 // pred_fallthru
          _
        %s122 = sand.u32 %s26, 1
        %s123 = scalar_lea.sflag [#allocation3], %s122
        %s124 = sand.u32 %s26, 1
        %s125 = smul.addr %s124, 448
        %s126 = scalar_lea.vmem [#allocation2], %s125
        %p127 = pneg %p39
        %p128 = pneg %p36
        %p129 = pneg %p65
        %p130 = pneg %p62
        %s131 = sand.u32 %s52, 1
        %s132 = scalar_lea.sflag [#allocation4], %s131
        %s133 = sand.u32 %s52, 1
        %s134 = smul.addr %s133, 448
        %s135 = scalar_lea.vmem [#allocation5], %s134
        %s136 = smul.u32 7, %s18
        %s137 = smul.u32 7, %s18
        %v138 = vld [vmem:[%s117] sm:$0xff]
        %v139 = vld [vmem:[%s117 + $0x8] sm:$0xff]
        %v140 = vld [vmem:[%s117 + $0x10] sm:$0xff]
        %v141 = vld [vmem:[%s117 + $0x18] sm:$0xff]
        %v142 = vld [vmem:[%s117 + $0x20] sm:$0xff]
        %v143 = vld [vmem:[%s117 + $0x28] sm:$0xff]
        %v144 = vld [vmem:[%s117 + $0x30] sm:$0xff]
        %v145 = vld [vmem:[%s117 + $0x38] sm:$0xff]
        %v146 = vld [vmem:[%s117 + $0x40] sm:$0xff]
        %v147 = vld [vmem:[%s117 + $0x48] sm:$0xff]
        %v148 = vld [vmem:[%s117 + $0x50] sm:$0xff]
        %v149 = vld [vmem:[%s117 + $0x58] sm:$0xff]
        %v150 = vld [vmem:[%s117 + $0x60] sm:$0xff]
        %v151 = vld [vmem:[%s117 + $0x68] sm:$0xff]
        %v152 = vld [vmem:[%s117 + $0x70] sm:$0xff]
        %v153 = vld [vmem:[%s117 + $0x78] sm:$0xff]
        %v154 = vld [vmem:[%s117 + $0x80] sm:$0xff]
        %v155 = vld [vmem:[%s117 + $0x88] sm:$0xff]
        %v156 = vld [vmem:[%s117 + $0x90] sm:$0xff]
        %v157 = vld [vmem:[%s117 + $0x98] sm:$0xff]
        %v158 = vld [vmem:[%s117 + $0xa0] sm:$0xff]
        %v159 = vld [vmem:[%s117 + $0xa8] sm:$0xff]
        %v160 = vld [vmem:[%s117 + $0xb0] sm:$0xff]
        %v161 = vld [vmem:[%s117 + $0xb8] sm:$0xff]
        %v162 = vld [vmem:[%s117 + $0xc0] sm:$0xff]
        %v163 = vld [vmem:[%s117 + $0xc8] sm:$0xff]
        %v164 = vld [vmem:[%s117 + $0xd0] sm:$0xff]
        %v165 = vld [vmem:[%s117 + $0xd8] sm:$0xff]
        %v166 = vld [vmem:[%s117 + $0xe0] sm:$0xff]
        %v167 = vld [vmem:[%s117 + $0xe8] sm:$0xff]
        %v168 = vld [vmem:[%s117 + $0xf0] sm:$0xff]
        %v169 = vld [vmem:[%s117 + $0xf8] sm:$0xff]
        %v170 = vld [vmem:[%s117 + $0x100] sm:$0xff]
        %v171 = vld [vmem:[%s117 + $0x108] sm:$0xff]
        %v172 = vld [vmem:[%s117 + $0x110] sm:$0xff]
        %v173 = vld [vmem:[%s117 + $0x118] sm:$0xff]
        %v174 = vld [vmem:[%s117 + $0x120] sm:$0xff]
        %v175 = vld [vmem:[%s117 + $0x128] sm:$0xff]
        %v176 = vld [vmem:[%s117 + $0x130] sm:$0xff]
        %v177 = vld [vmem:[%s117 + $0x138] sm:$0xff]
        %v178 = vld [vmem:[%s117 + $0x140] sm:$0xff]
        %v179 = vld [vmem:[%s117 + $0x148] sm:$0xff]
        %v180 = vld [vmem:[%s117 + $0x150] sm:$0xff]
        %v181 = vld [vmem:[%s117 + $0x158] sm:$0xff]
        %v182 = vld [vmem:[%s117 + $0x160] sm:$0xff]
        %v183 = vld [vmem:[%s117 + $0x168] sm:$0xff]
        %v184 = vld [vmem:[%s117 + $0x170] sm:$0xff]
        %v185 = vld [vmem:[%s117 + $0x178] sm:$0xff]
        %v186 = vld [vmem:[%s117 + $0x180] sm:$0xff]
        %v187 = vld [vmem:[%s117 + $0x188] sm:$0xff]
        %v188 = vld [vmem:[%s117 + $0x190] sm:$0xff]
        %v189 = vld [vmem:[%s117 + $0x198] sm:$0xff]
        %v190 = vld [vmem:[%s117 + $0x1a0] sm:$0xff]
        %v191 = vld [vmem:[%s117 + $0x1a8] sm:$0xff]
        %v192 = vld [vmem:[%s117 + $0x1b0] sm:$0xff]
        %v193 = vld [vmem:[%s117 + $0x1b8] sm:$0xff]
        %v194 = vmul.f32 %v138, 0.5
        %v195 = vmul.f32 %v139, 0.5
        %v196 = vmul.f32 %v140, 0.5
        %v197 = vmul.f32 %v141, 0.5
        %v198 = vmul.f32 %v142, 0.5
        %v199 = vmul.f32 %v143, 0.5
        %v200 = vmul.f32 %v144, 0.5
        %v201 = vmul.f32 %v145, 0.5
        %v202 = vmul.f32 %v146, 0.5
        %v203 = vmul.f32 %v147, 0.5
        %v204 = vmul.f32 %v148, 0.5
        %v205 = vmul.f32 %v149, 0.5
        %v206 = vmul.f32 %v150, 0.5
        %v207 = vmul.f32 %v151, 0.5
        %v208 = vmul.f32 %v152, 0.5
        %v209 = vmul.f32 %v153, 0.5
        %v210 = vmul.f32 %v154, 0.5
        %v211 = vmul.f32 %v155, 0.5
        %v212 = vmul.f32 %v156, 0.5
        %v213 = vmul.f32 %v157, 0.5
        %v214 = vmul.f32 %v158, 0.5
        %v215 = vmul.f32 %v159, 0.5
        %v216 = vmul.f32 %v160, 0.5
        %v217 = vmul.f32 %v161, 0.5
        %v218 = vmul.f32 %v162, 0.5
        %v219 = vmul.f32 %v163, 0.5
        %v220 = vmul.f32 %v164, 0.5
        %v221 = vmul.f32 %v165, 0.5
        %v222 = vmul.f32 %v166, 0.5
        %v223 = vmul.f32 %v167, 0.5
        %v224 = vmul.f32 %v168, 0.5
        %v225 = vmul.f32 %v169, 0.5
        %v226 = vmul.f32 %v170, 0.5
        %v227 = vmul.f32 %v171, 0.5
        %v228 = vmul.f32 %v172, 0.5
        %v229 = vmul.f32 %v173, 0.5
        %v230 = vmul.f32 %v174, 0.5
        %v231 = vmul.f32 %v175, 0.5
        %v232 = vmul.f32 %v176, 0.5
        %v233 = vmul.f32 %v177, 0.5
        %v234 = vmul.f32 %v178, 0.5
        %v235 = vmul.f32 %v179, 0.5
        %v236 = vmul.f32 %v180, 0.5
        %v237 = vmul.f32 %v181, 0.5
        %v238 = vmul.f32 %v182, 0.5
        %v239 = vmul.f32 %v183, 0.5
        %v240 = vmul.f32 %v184, 0.5
        %v241 = vmul.f32 %v185, 0.5
        %v242 = vmul.f32 %v186, 0.5
        %v243 = vmul.f32 %v187, 0.5
        %v244 = vmul.f32 %v188, 0.5
        %v245 = vmul.f32 %v189, 0.5
        %v246 = vmul.f32 %v190, 0.5
        %v247 = vmul.f32 %v191, 0.5
        %v248 = vmul.f32 %v192, 0.5
        %v249 = vmul.f32 %v193, 0.5
        %v250 = vmul.f32 %v138, 0.70710677
        %v251 = vmul.f32 %v139, 0.70710677
        %v252 = vmul.f32 %v140, 0.70710677
        %v253 = vmul.f32 %v141, 0.70710677
        %v254 = vmul.f32 %v142, 0.70710677
        %v255 = vmul.f32 %v143, 0.70710677
        %v256 = vmul.f32 %v144, 0.70710677
        %v257 = vmul.f32 %v145, 0.70710677
        %v258 = vmul.f32 %v146, 0.70710677
        %v259 = vmul.f32 %v147, 0.70710677
        %v260 = vmul.f32 %v148, 0.70710677
        %v261 = vmul.f32 %v149, 0.70710677
        %v262 = vmul.f32 %v150, 0.70710677
        %v263 = vmul.f32 %v151, 0.70710677
        %v264 = vmul.f32 %v152, 0.70710677
        %v265 = vmul.f32 %v153, 0.70710677
        %v266 = vmul.f32 %v154, 0.70710677
        %v267 = vmul.f32 %v155, 0.70710677
        %v268 = vmul.f32 %v156, 0.70710677
        %v269 = vmul.f32 %v157, 0.70710677
        %v270 = vmul.f32 %v158, 0.70710677
        %v271 = vmul.f32 %v159, 0.70710677
        %v272 = vmul.f32 %v160, 0.70710677
        %v273 = vmul.f32 %v161, 0.70710677
        %v274 = vmul.f32 %v162, 0.70710677
        %v275 = vmul.f32 %v163, 0.70710677
        %v276 = vmul.f32 %v164, 0.70710677
        %v277 = vmul.f32 %v165, 0.70710677
        %v278 = vmul.f32 %v166, 0.70710677
        %v279 = vmul.f32 %v167, 0.70710677
        %v280 = vmul.f32 %v168, 0.70710677
        %v281 = vmul.f32 %v169, 0.70710677
        %v282 = vmul.f32 %v170, 0.70710677
        %v283 = vmul.f32 %v171, 0.70710677
        %v284 = vmul.f32 %v172, 0.70710677
        %v285 = vmul.f32 %v173, 0.70710677
        %v286 = vmul.f32 %v174, 0.70710677
        %v287 = vmul.f32 %v175, 0.70710677
        %v288 = vmul.f32 %v176, 0.70710677
        %v289 = vmul.f32 %v177, 0.70710677
        %v290 = vmul.f32 %v178, 0.70710677
        %v291 = vmul.f32 %v179, 0.70710677
        %v292 = vmul.f32 %v180, 0.70710677
        %v293 = vmul.f32 %v181, 0.70710677
        %v294 = vmul.f32 %v182, 0.70710677
        %v295 = vmul.f32 %v183, 0.70710677
        %v296 = vmul.f32 %v184, 0.70710677
        %v297 = vmul.f32 %v185, 0.70710677
        %v298 = vmul.f32 %v186, 0.70710677
        %v299 = vmul.f32 %v187, 0.70710677
        %v300 = vmul.f32 %v188, 0.70710677
        %v301 = vmul.f32 %v189, 0.70710677
        %v302 = vmul.f32 %v190, 0.70710677
        %v303 = vmul.f32 %v191, 0.70710677
        %v304 = vmul.f32 %v192, 0.70710677
        %v305 = vmul.f32 %v193, 0.70710677
        %v306 = verf.f32.pop %v250
        %v307 = verf.f32.pop %v251
        %v308 = verf.f32.pop %v252
        %v309 = verf.f32.pop %v253
        %v310 = verf.f32.pop %v254
        %v311 = verf.f32.pop %v255
        %v312 = verf.f32.pop %v256
        %v313 = verf.f32.pop %v257
        %v314 = verf.f32.pop %v258
        %v315 = verf.f32.pop %v259
        %v316 = verf.f32.pop %v260
        %v317 = verf.f32.pop %v261
        %v318 = verf.f32.pop %v262
        %v319 = verf.f32.pop %v263
        %v320 = verf.f32.pop %v264
        %v321 = verf.f32.pop %v265
        %v322 = verf.f32.pop %v266
        %v323 = verf.f32.pop %v267
        %v324 = verf.f32.pop %v268
        %v325 = verf.f32.pop %v269
        %v326 = verf.f32.pop %v270
        %v327 = verf.f32.pop %v271
        %v328 = verf.f32.pop %v272
        %v329 = verf.f32.pop %v273
        %v330 = verf.f32.pop %v274
        %v331 = verf.f32.pop %v275
        %v332 = verf.f32.pop %v276
        %v333 = verf.f32.pop %v277
        %v334 = verf.f32.pop %v278
        %v335 = verf.f32.pop %v279
        %v336 = verf.f32.pop %v280
        %v337 = verf.f32.pop %v281
        %v338 = verf.f32.pop %v282
        %v339 = verf.f32.pop %v283
        %v340 = verf.f32.pop %v284
        %v341 = verf.f32.pop %v285
        %v342 = verf.f32.pop %v286
        %v343 = verf.f32.pop %v287
        %v344 = verf.f32.pop %v288
        %v345 = verf.f32.pop %v289
        %v346 = verf.f32.pop %v290
        %v347 = verf.f32.pop %v291
        %v348 = verf.f32.pop %v292
        %v349 = verf.f32.pop %v293
        %v350 = verf.f32.pop %v294
        %v351 = verf.f32.pop %v295
        %v352 = verf.f32.pop %v296
        %v353 = verf.f32.pop %v297
        %v354 = verf.f32.pop %v298
        %v355 = verf.f32.pop %v299
        %v356 = verf.f32.pop %v300
        %v357 = verf.f32.pop %v301
        %v358 = verf.f32.pop %v302
        %v359 = verf.f32.pop %v303
        %v360 = verf.f32.pop %v304
        %v361 = verf.f32.pop %v305
        %v362 = vadd.f32 %v306, 1.0
        %v363 = vadd.f32 %v307, 1.0
        %v364 = vadd.f32 %v308, 1.0
        %v365 = vadd.f32 %v309, 1.0
        %v366 = vadd.f32 %v310, 1.0
        %v367 = vadd.f32 %v311, 1.0
        %v368 = vadd.f32 %v312, 1.0
        %v369 = vadd.f32 %v313, 1.0
        %v370 = vadd.f32 %v314, 1.0
        %v371 = vadd.f32 %v315, 1.0
        %v372 = vadd.f32 %v316, 1.0
        %v373 = vadd.f32 %v317, 1.0
        %v374 = vadd.f32 %v318, 1.0
        %v375 = vadd.f32 %v319, 1.0
        %v376 = vadd.f32 %v320, 1.0
        %v377 = vadd.f32 %v321, 1.0
        %v378 = vadd.f32 %v322, 1.0
        %v379 = vadd.f32 %v323, 1.0
        %v380 = vadd.f32 %v324, 1.0
        %v381 = vadd.f32 %v325, 1.0
        %v382 = vadd.f32 %v326, 1.0
        %v383 = vadd.f32 %v327, 1.0
        %v384 = vadd.f32 %v328, 1.0
        %v385 = vadd.f32 %v329, 1.0
        %v386 = vadd.f32 %v330, 1.0
        %v387 = vadd.f32 %v331, 1.0
        %v388 = vadd.f32 %v332, 1.0
        %v389 = vadd.f32 %v333, 1.0
        %v390 = vadd.f32 %v334, 1.0
        %v391 = vadd.f32 %v335, 1.0
        %v392 = vadd.f32 %v336, 1.0
        %v393 = vadd.f32 %v337, 1.0
        %v394 = vadd.f32 %v338, 1.0
        %v395 = vadd.f32 %v339, 1.0
        %v396 = vadd.f32 %v340, 1.0
        %v397 = vadd.f32 %v341, 1.0
        %v398 = vadd.f32 %v342, 1.0
        %v399 = vadd.f32 %v343, 1.0
        %v400 = vadd.f32 %v344, 1.0
        %v401 = vadd.f32 %v345, 1.0
        %v402 = vadd.f32 %v346, 1.0
        %v403 = vadd.f32 %v347, 1.0
        %v404 = vadd.f32 %v348, 1.0
        %v405 = vadd.f32 %v349, 1.0
        %v406 = vadd.f32 %v350, 1.0
        %v407 = vadd.f32 %v351, 1.0
        %v408 = vadd.f32 %v352, 1.0
        %v409 = vadd.f32 %v353, 1.0
        %v410 = vadd.f32 %v354, 1.0
        %v411 = vadd.f32 %v355, 1.0
        %v412 = vadd.f32 %v356, 1.0
        %v413 = vadd.f32 %v357, 1.0
        %v414 = vadd.f32 %v358, 1.0
        %v415 = vadd.f32 %v359, 1.0
        %v416 = vadd.f32 %v360, 1.0
        %v417 = vadd.f32 %v361, 1.0
        %v418 = vmul.f32 %v194, %v362
        %v419 = vmul.f32 %v195, %v363
        %v420 = vmul.f32 %v196, %v364
        %v421 = vmul.f32 %v197, %v365
        %v422 = vmul.f32 %v198, %v366
        %v423 = vmul.f32 %v199, %v367
        %v424 = vmul.f32 %v200, %v368
        %v425 = vmul.f32 %v201, %v369
        %v426 = vmul.f32 %v202, %v370
        %v427 = vmul.f32 %v203, %v371
        %v428 = vmul.f32 %v204, %v372
        %v429 = vmul.f32 %v205, %v373
        %v430 = vmul.f32 %v206, %v374
        %v431 = vmul.f32 %v207, %v375
        %v432 = vmul.f32 %v208, %v376
        %v433 = vmul.f32 %v209, %v377
        %v434 = vmul.f32 %v210, %v378
        %v435 = vmul.f32 %v211, %v379
        %v436 = vmul.f32 %v212, %v380
        %v437 = vmul.f32 %v213, %v381
        %v438 = vmul.f32 %v214, %v382
        %v439 = vmul.f32 %v215, %v383
        %v440 = vmul.f32 %v216, %v384
        %v441 = vmul.f32 %v217, %v385
        %v442 = vmul.f32 %v218, %v386
        %v443 = vmul.f32 %v219, %v387
        %v444 = vmul.f32 %v220, %v388
        %v445 = vmul.f32 %v221, %v389
        %v446 = vmul.f32 %v222, %v390
        %v447 = vmul.f32 %v223, %v391
        %v448 = vmul.f32 %v224, %v392
        %v449 = vmul.f32 %v225, %v393
        %v450 = vmul.f32 %v226, %v394
        %v451 = vmul.f32 %v227, %v395
        %v452 = vmul.f32 %v228, %v396
        %v453 = vmul.f32 %v229, %v397
        %v454 = vmul.f32 %v230, %v398
        %v455 = vmul.f32 %v231, %v399
        %v456 = vmul.f32 %v232, %v400
        %v457 = vmul.f32 %v233, %v401
        %v458 = vmul.f32 %v234, %v402
        %v459 = vmul.f32 %v235, %v403
        %v460 = vmul.f32 %v236, %v404
        %v461 = vmul.f32 %v237, %v405
        %v462 = vmul.f32 %v238, %v406
        %v463 = vmul.f32 %v239, %v407
        %v464 = vmul.f32 %v240, %v408
        %v465 = vmul.f32 %v241, %v409
        %v466 = vmul.f32 %v242, %v410
        %v467 = vmul.f32 %v243, %v411
        %v468 = vmul.f32 %v244, %v412
        %v469 = vmul.f32 %v245, %v413
        %v470 = vmul.f32 %v246, %v414
        %v471 = vmul.f32 %v247, %v415
        %v472 = vmul.f32 %v248, %v416
        %v473 = vmul.f32 %v249, %v417
        %474 = vst [vmem:[%s135] sm:$0xff] %v418
        %475 = vst [vmem:[%s135 + $0x8] sm:$0xff] %v419
        %476 = vst [vmem:[%s135 + $0x10] sm:$0xff] %v420
        %477 = vst [vmem:[%s135 + $0x18] sm:$0xff] %v421
        %478 = vst [vmem:[%s135 + $0x20] sm:$0xff] %v422
        %479 = vst [vmem:[%s135 + $0x28] sm:$0xff] %v423
        %480 = vst [vmem:[%s135 + $0x30] sm:$0xff] %v424
        %481 = vst [vmem:[%s135 + $0x38] sm:$0xff] %v425
        %482 = vst [vmem:[%s135 + $0x40] sm:$0xff] %v426
        %483 = vst [vmem:[%s135 + $0x48] sm:$0xff] %v427
        %484 = vst [vmem:[%s135 + $0x50] sm:$0xff] %v428
        %485 = vst [vmem:[%s135 + $0x58] sm:$0xff] %v429
        %486 = vst [vmem:[%s135 + $0x60] sm:$0xff] %v430
        %487 = vst [vmem:[%s135 + $0x68] sm:$0xff] %v431
        %488 = vst [vmem:[%s135 + $0x70] sm:$0xff] %v432
        %489 = vst [vmem:[%s135 + $0x78] sm:$0xff] %v433
        %490 = vst [vmem:[%s135 + $0x80] sm:$0xff] %v434
        %491 = vst [vmem:[%s135 + $0x88] sm:$0xff] %v435
        %492 = vst [vmem:[%s135 + $0x90] sm:$0xff] %v436
        %493 = vst [vmem:[%s135 + $0x98] sm:$0xff] %v437
        %494 = vst [vmem:[%s135 + $0xa0] sm:$0xff] %v438
        %495 = vst [vmem:[%s135 + $0xa8] sm:$0xff] %v439
        %496 = vst [vmem:[%s135 + $0xb0] sm:$0xff] %v440
        %497 = vst [vmem:[%s135 + $0xb8] sm:$0xff] %v441
        %498 = vst [vmem:[%s135 + $0xc0] sm:$0xff] %v442
        %499 = vst [vmem:[%s135 + $0xc8] sm:$0xff] %v443
        %500 = vst [vmem:[%s135 + $0xd0] sm:$0xff] %v444
        %501 = vst [vmem:[%s135 + $0xd8] sm:$0xff] %v445
        %502 = vst [vmem:[%s135 + $0xe0] sm:$0xff] %v446
        %503 = vst [vmem:[%s135 + $0xe8] sm:$0xff] %v447
        %504 = vst [vmem:[%s135 + $0xf0] sm:$0xff] %v448
        %505 = vst [vmem:[%s135 + $0xf8] sm:$0xff] %v449
        %506 = vst [vmem:[%s135 + $0x100] sm:$0xff] %v450
        %507 = vst [vmem:[%s135 + $0x108] sm:$0xff] %v451
        %508 = vst [vmem:[%s135 + $0x110] sm:$0xff] %v452
        %509 = vst [vmem:[%s135 + $0x118] sm:$0xff] %v453
        %510 = vst [vmem:[%s135 + $0x120] sm:$0xff] %v454
        %511 = vst [vmem:[%s135 + $0x128] sm:$0xff] %v455
        %512 = vst [vmem:[%s135 + $0x130] sm:$0xff] %v456
        %513 = vst [vmem:[%s135 + $0x138] sm:$0xff] %v457
        %514 = vst [vmem:[%s135 + $0x140] sm:$0xff] %v458
        %515 = vst [vmem:[%s135 + $0x148] sm:$0xff] %v459
        %516 = vst [vmem:[%s135 + $0x150] sm:$0xff] %v460
        %517 = vst [vmem:[%s135 + $0x158] sm:$0xff] %v461
        %518 = vst [vmem:[%s135 + $0x160] sm:$0xff] %v462
        %519 = vst [vmem:[%s135 + $0x168] sm:$0xff] %v463
        %520 = vst [vmem:[%s135 + $0x170] sm:$0xff] %v464
        %521 = vst [vmem:[%s135 + $0x178] sm:$0xff] %v465
        %522 = vst [vmem:[%s135 + $0x180] sm:$0xff] %v466
        %523 = vst [vmem:[%s135 + $0x188] sm:$0xff] %v467
        %524 = vst [vmem:[%s135 + $0x190] sm:$0xff] %v468
        %525 = vst [vmem:[%s135 + $0x198] sm:$0xff] %v469
        %526 = vst [vmem:[%s135 + $0x1a0] sm:$0xff] %v470
        %527 = vst [vmem:[%s135 + $0x1a8] sm:$0xff] %v471
        %528 = vst [vmem:[%s135 + $0x1b0] sm:$0xff] %v472
        %529 = vst [vmem:[%s135 + $0x1b8] sm:$0xff] %v473
        %s530 = sand.u32 %s52, 1
        %s531 = scalar_lea.sflag [#allocation4], %s530
        %s532 = sand.u32 %s52, 1
        %s533 = smul.addr %s532, 448
        %s534 = scalar_lea.vmem [#allocation5], %s533
        // Predicated region
        $region29: #{tpu_custom_call.1} parent=23 // pred_check
          %p535 = pneg %p62
        $region30: #{tpu_custom_call.1} parent=23 // pred_check_branch
          %537 = sbr.rel (%p535) target = $region32
        $region31: #{tpu_custom_call.1} parent=23 // pred_region
          %s538 = smul.u32 7, %s18
          %s540 = ssub.s32 7168, 7168
          %541 = vsyncadd %s531, %s540
          %s542 = smul.addr %s538, 8
          %s543 = smul.addr %s542, 128
          %s544 = scalar_lea.hbm %s1, %s543
          %s545 = sshll.u32 %s534, 4
          %s546 = int_to_ptr.vmem [resolvable:$true] %s545
          %551 = dma.vmem_to_hbm [thread:$0]  %s546, 7168, %s544, %s531, 1024, 1024, 64
        $region32: #{tpu_custom_call.1} parent=23 // pred_fallthru
          _
      $region24: #{tpu_custom_call.1} parent=5 // pred_fallthru
        _
      %p552 = scmp.le.s32.totalorder 2, %s13
      // Predicated region
      $region33: #{tpu_custom_call.1} parent=5 // pred_check
        %p553 = pneg %p552
      $region34: #{tpu_custom_call.1} parent=5 // pred_check_branch
        %555 = sbr.rel (%p553) target = $region36
      $region35: #{tpu_custom_call.1} parent=5 // pred_region
        %s556 = ssub.s32 %s13, 2
        // Predicated region
        $region37: #{tpu_custom_call.1} parent=35 // pred_check
          %p557 = pneg %p68
        $region38: #{tpu_custom_call.1} parent=35 // pred_check_branch
          %559 = sbr.rel (%p557) target = $region40
        $region39: #{tpu_custom_call.1} parent=35 // pred_region
          %s560 = sand.u32 %s53, 1
          %s561 = scalar_lea.sflag [#allocation4], %s560
          %s562 = sand.u32 %s53, 1
          %s563 = smul.addr %s562, 448
          %s564 = scalar_lea.vmem [#allocation5], %s563
          %565 = dma.done %s561, 7168
        $region40: #{tpu_custom_call.1} parent=35 // pred_fallthru
          _
      $region36: #{tpu_custom_call.1} parent=5 // pred_fallthru
        _
    $region6: #{tpu_custom_call.1} parent=1 // loop_footer
      %s17 = sadd.s32 1, %s13
    $region7: #{tpu_custom_call.1} parent=1 // loop_footer_branch
      %12 = sbr.rel target = $region3
    $region8: #{tpu_custom_call.1} parent=1 // loop_exit
      _
    %566 = vsyncpa [#allocation3], 1
    %s567 = scalar_lea.sflag [#allocation3], 1
    %568 = vsyncpa %s567, 1
    %569 = vsyncpa [#allocation4], 1
    %s570 = scalar_lea.sflag [#allocation4], 1
    %571 = vsyncpa %s570, 1

</llo_original>
